<compile_context>
chip_gen: v5e
topology: v5e:2x2
jax: 0.10.0
libtpu: 0.0.40
codegen_flags: <defaults>
</compile_context>

<pallas_src>
import functools
import math

import jax
import jax.numpy as jnp
from jax.experimental import pallas as pl
from jax.experimental.pallas import tpu as pltpu


# ----------------------------------------------------------------------------
# Pallas kernels
# ----------------------------------------------------------------------------

def _mm_bias_kernel(x_ref, w_ref, b_ref, o_ref, *, relu):
    # x: (TM, K) bf16, w: (K, TN) bf16, b: (1, TN) f32 -> f32 epilogue -> bf16 out
    acc = jnp.dot(x_ref[...], w_ref[...], preferred_element_type=jnp.float32)
    acc = acc + b_ref[...]
    if relu:
        acc = jnp.maximum(acc, 0.0)
    o_ref[...] = acc.astype(o_ref.dtype)


def _mm_bias_res_relu_kernel(x_ref, w_ref, b_ref, r_ref, o_ref):
    # conv2 of a residual block: out = relu(x @ w + b + identity), identity in bf16
    acc = jnp.dot(x_ref[...], w_ref[...], preferred_element_type=jnp.float32)
    acc = acc + b_ref[...] + r_ref[...].astype(jnp.float32)
    o_ref[...] = jnp.maximum(acc, 0.0).astype(o_ref.dtype)


def _mm_bias_kacc_kernel(x_ref, w_ref, b_ref, o_ref, acc_ref, *, relu):
    # K-chunked matmul: f32 VMEM accumulator, bias/ReLU epilogue on last k step.
    k = pl.program_id(2)

    @pl.when(k == 0)
    def _():
        acc_ref[...] = jnp.zeros_like(acc_ref)

    acc_ref[...] += jnp.dot(x_ref[...], w_ref[...],
                            preferred_element_type=jnp.float32)

    @pl.when(k == pl.num_programs(2) - 1)
    def _():
        acc = acc_ref[...] + b_ref[...]
        if relu:
            acc = jnp.maximum(acc, 0.0)
        o_ref[...] = acc.astype(o_ref.dtype)


def _mm_bias_res_relu_kacc_kernel(x_ref, w_ref, b_ref, r_ref, o_ref, acc_ref):
    # K-chunked conv2 with fused residual add + ReLU epilogue.
    k = pl.program_id(2)

    @pl.when(k == 0)
    def _():
        acc_ref[...] = jnp.zeros_like(acc_ref)

    acc_ref[...] += jnp.dot(x_ref[...], w_ref[...],
                            preferred_element_type=jnp.float32)

    @pl.when(k == pl.num_programs(2) - 1)
    def _():
        acc = acc_ref[...] + b_ref[...] + r_ref[...].astype(jnp.float32)
        o_ref[...] = jnp.maximum(acc, 0.0).astype(o_ref.dtype)


def _avgpool_fc_kernel(x_ref, w_ref, b_ref, o_ref):
    # x: (Nb, H*W, C) bf16 -> f32 mean over spatial -> bf16 matmul -> f32 + bias
    pooled = jnp.mean(x_ref[...].astype(jnp.float32), axis=1)
    acc = jnp.dot(pooled.astype(jnp.bfloat16), w_ref[...],
                  preferred_element_type=jnp.float32)
    o_ref[...] = acc + b_ref[...]


# ----------------------------------------------------------------------------
# Helpers
# ----------------------------------------------------------------------------

def _pad_to(x, m):
    return ((x + m - 1) // m) * m


@functools.lru_cache(maxsize=None)
def _tensorcores_per_chip():
    # Only v7x (among the v5e / v6e / v7x targets) has 2 TensorCores per chip;
    # the output-column split only pays off there.
    try:
        kind = jax.devices()[0].device_kind.lower()
    except Exception:
        return 1
    return 2 if ("v7" in kind or "7x" in kind) else 1


# ----------------------------------------------------------------------------
# Pallas wrappers
# ----------------------------------------------------------------------------

def fused_matmul(x2, w_pad, b_pad, residual, relu, n_valid):
    """out = act(x2 @ w_pad + b_pad [+ residual]) sliced to (M, n_valid), bf16.

    x2:        (M, K)   bf16 activation patches (K unpadded)
    w_pad:     (K, Np)  bf16, BN scale folded in, padded along N only
    b_pad:     (1, Np)  f32
    residual:  (M, n_valid) bf16 or None (fused residual add + ReLU)
    """
    M, K = x2.shape
    Kw, Np = w_pad.shape
    assert Kw == K, (Kw, K)

    # M padded only to the bf16 sublane pack (16); one M tile up to 512 rows.
    Mp = max(16, _pad_to(M, 16))
    if Mp <= 512:
        TM = Mp
    else:
        TM = 256
        Mp = _pad_to(Mp, TM)

    # Split N only on a 2-TensorCore chip (v7x) and only when each half is still
    # a full 256-wide MXU tile. Single-TC chips keep a single full-width tile.
    if _tensorcores_per_chip() >= 2 and Np >= 512:
        TN = Np // 2
    else:
        TN = Np

    # K-chunk the big layer3/4 weights (K = 2304/4608) so weight DMA streams
    # behind compute instead of being an exposed prologue.
    TK = 1152
    if K >= 2 * TK and K % TK == 0:
        nk = K // TK
    else:
        nk = 1
        TK = K

    xp = x2 if Mp == M else jnp.pad(x2, ((0, Mp - M), (0, 0)))

    args = [xp, w_pad, b_pad]
    if residual is not None:
        rp = residual
        if Mp != M or Np != residual.shape[1]:
            rp = jnp.pad(residual, ((0, Mp - M), (0, Np - residual.shape[1])))
        args.append(rp)

    if nk == 1:
        grid = (Mp // TM, Np // TN)
        in_specs = [
            pl.BlockSpec((TM, K), lambda i, j: (i, 0)),
            pl.BlockSpec((K, TN), lambda i, j: (0, j)),
            pl.BlockSpec((1, TN), lambda i, j: (0, j)),
        ]
        if residual is not None:
            in_specs.append(pl.BlockSpec((TM, TN), lambda i, j: (i, j)))
            kernel = _mm_bias_res_relu_kernel
        else:
            kernel = functools.partial(_mm_bias_kernel, relu=relu)
        out_specs = pl.BlockSpec((TM, TN), lambda i, j: (i, j))
        scratch = []
        semantics = ("parallel", "parallel")
    else:
        grid = (Mp // TM, Np // TN, nk)
        in_specs = [
            pl.BlockSpec((TM, TK), lambda i, j, k: (i, k)),
            pl.BlockSpec((TK, TN), lambda i, j, k: (k, j)),
            pl.BlockSpec((1, TN), lambda i, j, k: (0, j)),
        ]
        if residual is not None:
            in_specs.append(pl.BlockSpec((TM, TN), lambda i, j, k: (i, j)))
            kernel = _mm_bias_res_relu_kacc_kernel
        else:
            kernel = functools.partial(_mm_bias_kacc_kernel, relu=relu)
        out_specs = pl.BlockSpec((TM, TN), lambda i, j, k: (i, j))
        scratch = [pltpu.VMEM((TM, TN), jnp.float32)]
        semantics = ("parallel", "parallel", "arbitrary")

    out = pl.pallas_call(
        kernel,
        out_shape=jax.ShapeDtypeStruct((Mp, Np), jnp.bfloat16),
        grid=grid,
        in_specs=in_specs,
        out_specs=out_specs,
        scratch_shapes=scratch,
        compiler_params=pltpu.CompilerParams(
            dimension_semantics=semantics,
            vmem_limit_bytes=32 * 1024 * 1024,
        ),
    )(*args)
    return out[:M, :n_valid]


def maxpool2d_3x3_s2_p1(x):
    """PyTorch MaxPool2d(kernel_size=3, stride=2, padding=1), NHWC bf16 input.

    Folded with jnp.maximum in XLA: the taps fuse into one elementwise loop, so no
    9x-stacked HBM copy and no lane-sparse (C=64) Pallas stores.
    TODO(synk): fuse the 3x3 max into conv1's matmul epilogue instead.
    """
    N, H, W, C = x.shape
    Ho = (H + 2 - 3) // 2 + 1
    Wo = (W + 2 - 3) // 2 + 1
    xp = jnp.pad(x, ((0, 0), (1, 1), (1, 1), (0, 0)),
                 constant_values=-jnp.inf)
    out = None
    for dy in range(3):
        for dx in range(3):
            tap = xp[:, dy:dy + 2 * (Ho - 1) + 1:2,
                     dx:dx + 2 * (Wo - 1) + 1:2, :]
            out = tap if out is None else jnp.maximum(out, tap)
    return out


def avgpool_fc(x, fc):
    """Fused global-average-pool + final Linear. x: (N, H, W, C) bf16."""
    N, H, W, C = x.shape
    Nb = max(16, _pad_to(N, 16))     # bf16 sublane pack
    x2 = jnp.pad(x.reshape(N, H * W, C), ((0, Nb - N), (0, 0), (0, 0)))
    out = pl.pallas_call(
        _avgpool_fc_kernel,
        out_shape=jax.ShapeDtypeStruct((Nb, fc["w"].shape[1]), jnp.float32),
    )(x2, fc["w"], fc["b"])
    return out[:N, :fc["n"]]


# ----------------------------------------------------------------------------
# Conv via im2col (XLA glue, bf16) + Pallas matmul with fused BN/bias/ReLU/residual
# ----------------------------------------------------------------------------

def im2col(x, kh, kw, stride, pad):
    N, H, W, C = x.shape
    Ho = (H + 2 * pad - kh) // stride + 1
    Wo = (W + 2 * pad - kw) // stride + 1
    xp = jnp.pad(x, ((0, 0), (pad, pad), (pad, pad), (0, 0)))
    cols = []
    for dy in range(kh):
        for dx in range(kw):
            cols.append(xp[:, dy:dy + stride * (Ho - 1) + 1:stride,
                           dx:dx + stride * (Wo - 1) + 1:stride, :])
    patches = jnp.concatenate(cols, axis=-1)  # (N, Ho, Wo, kh*kw*C) bf16
    return patches, Ho, Wo


def conv_bn_act(x, cp, kh, kw, stride, pad, relu, residual=None):
    """x: NHWC bf16. cp: prepared conv params (bf16 weight padded in N, f32 bias)."""
    N = x.shape[0]
    patches, Ho, Wo = im2col(x, kh, kw, stride, pad)
    M = N * Ho * Wo
    x2 = patches.reshape(M, patches.shape[-1])
    res2 = (residual.reshape(M, residual.shape[-1])
            if residual is not None else None)
    y = fused_matmul(x2, cp["w"], cp["b"], res2, relu, cp["n"])
    return y.reshape(N, Ho, Wo, cp["n"])


# ----------------------------------------------------------------------------
# Parameter construction (raw, PyTorch-like) and one-time inference prep
# ----------------------------------------------------------------------------

def xavier_conv(key, shape):
    cout, cin, kh, kw = shape
    fan_in, fan_out = cin * kh * kw, cout * kh * kw
    bound = math.sqrt(6.0 / (fan_in + fan_out))
    return jax.random.uniform(key, shape, jnp.float32, -bound, bound)


def xavier_fc(key, shape):
    fout, fin = shape
    bound = math.sqrt(6.0 / (fin + fout))
    return jax.random.uniform(key, shape, jnp.float32, -bound, bound)


def conv_to_mat(w):
    # torch conv weight (Cout, Cin, kh, kw) -> (kh*kw*Cin, Cout), matching im2col order
    cout, cin, kh, kw = w.shape
    return jnp.transpose(w, (2, 3, 1, 0)).reshape(kh * kw * cin, cout)


def make_bn(key, c):
    k1, k2, k3, k4 = jax.random.split(key, 4)
    return dict(
        gamma=jax.random.uniform(k1, (c,), jnp.float32, 0.5, 1.5),
        beta=0.1 * jax.random.normal(k2, (c,), jnp.float32),
        mean=0.1 * jax.random.normal(k3, (c,), jnp.float32),
        var=jax.random.uniform(k4, (c,), jnp.float32, 0.5, 1.5),
    )


def make_block(key, cin, cout, stride):
    ks = jax.random.split(key, 6)
    p = dict(
        conv1=conv_to_mat(xavier_conv(ks[0], (cout, cin, 3, 3))),
        bn1=make_bn(ks[1], cout),
        conv2=conv_to_mat(xavier_conv(ks[2], (cout, cout, 3, 3))),
        bn2=make_bn(ks[3], cout),
        stride=stride,
    )
    if stride != 1 or cin != cout:
        p["down_conv"] = conv_to_mat(xavier_conv(ks[4], (cout, cin, 1, 1)))
        p["down_bn"] = make_bn(ks[5], cout)
    return p


def make_params(key):
    keys = jax.random.split(key, 12)
    params = {
        "conv1": conv_to_mat(xavier_conv(keys[0], (64, 3, 7, 7))),
        "bn1": make_bn(keys[1], 64),
    }
    cfg = [(64, 64, 1), (64, 128, 2), (128, 256, 2), (256, 512, 2)]
    kidx = 2
    for li, (cin, cout, stride) in enumerate(cfg, start=1):
        blocks = [make_block(keys[kidx], cin, cout, stride),
                  make_block(keys[kidx + 1], cout, cout, 1)]
        kidx += 2
        params[f"layer{li}"] = blocks
    params["fc_w"] = xavier_fc(keys[10], (4, 512)).T          # (512, 4)
    params["fc_b"] = 0.01 * jax.random.normal(keys[11], (4,), jnp.float32)
    return params


def _bn_fold(bn):
    eps = 1e-5
    scale = bn["gamma"] / jnp.sqrt(bn["var"] + eps)
    bias = bn["beta"] - bn["mean"] * scale
    return scale, bias


def _prep_conv(w_mat, bn):
    """Fold eval-mode BN into weight/bias, pad N to a lane multiple, cast to bf16.

    K is left unpadded (full-extent block shapes are exempt from the (8,128) rule),
    so the activation patch matrix never needs a call-time K pad copy.
    """
    if bn is not None:
        scale, bias = _bn_fold(bn)
        w = w_mat * scale[None, :]
    else:
        w = w_mat
        bias = jnp.zeros((w_mat.shape[1],), jnp.float32)
    K, N = w.shape
    Np = _pad_to(N, 128)
    wp = jnp.pad(w, ((0, 0), (0, Np - N))).astype(jnp.bfloat16)
    bp = jnp.pad(bias[None, :], ((0, 0), (0, Np - N))).astype(jnp.float32)
    return dict(w=wp, b=bp, n=N)


def prepare_inference_params(params):
    prepped = {
        "conv1": _prep_conv(params["conv1"], params["bn1"]),
    }
    for name in ("layer1", "layer2", "layer3", "layer4"):
        blocks = []
        for blk in params[name]:
            pb = dict(
                conv1=_prep_conv(blk["conv1"], blk["bn1"]),
                conv2=_prep_conv(blk["conv2"], blk["bn2"]),
                stride=blk["stride"],
            )
            if "down_conv" in blk:
                pb["down"] = _prep_conv(blk["down_conv"], blk["down_bn"])
            blocks.append(pb)
        prepped[name] = blocks
    fc_w = params["fc_w"]                                     # (512, 4)
    K, N = fc_w.shape
    Np = _pad_to(N, 128)
    prepped["fc"] = dict(
        w=jnp.pad(fc_w, ((0, 0), (0, Np - N))).astype(jnp.bfloat16),
        b=jnp.pad(params["fc_b"][None, :], ((0, 0), (0, Np - N))).astype(jnp.float32),
        n=N,
    )
    return prepped


# ----------------------------------------------------------------------------
# ResNet-18 forward
# ----------------------------------------------------------------------------

def block_forward(x, p):
    out = conv_bn_act(x, p["conv1"], 3, 3, p["stride"], 1, relu=True)
    if "down" in p:
        identity = conv_bn_act(x, p["down"], 1, 1, p["stride"], 0, relu=False)
    else:
        identity = x
    # conv2 + bias + residual add + ReLU fused into one matmul epilogue
    return conv_bn_act(out, p["conv2"], 3, 3, 1, 1, relu=True, residual=identity)


def resnet18_forward(x_nchw, prepped):
    # NCHW -> NHWC, single cast to bf16 at the network entry; activations stay bf16.
    x = jnp.transpose(x_nchw, (0, 2, 3, 1)).astype(jnp.bfloat16)
    x = conv_bn_act(x, prepped["conv1"], 7, 7, 2, 3, relu=True)   # conv1+bn1+relu
    x = maxpool2d_3x3_s2_p1(x)                                    # maxpool (XLA fold)
    for name in ("layer1", "layer2", "layer3", "layer4"):
        for blk in prepped[name]:
            x = block_forward(x, blk)
    return avgpool_fc(x, prepped["fc"])                           # avgpool + fc (f32)


if __name__ == "__main__":
    key = jax.random.PRNGKey(0)
    pkey, xkey = jax.random.split(key)
    raw_params = make_params(pkey)
    params = prepare_inference_params(raw_params)   # one-time BN fold / pad / bf16 cast
    x = jax.random.normal(xkey, (2, 3, 32, 32), jnp.float32)  # NCHW like PyTorch
    out = resnet18_forward(x, params)
    out = jax.block_until_ready(out)
    assert out.shape == (2, 4) and out.dtype == jnp.float32
    print("KERNEL_OK")
</pallas_src>

<mosaic_0001>
module attributes {stable_mosaic.version = 11 : i64} {
  func.func @_mm_bias_kernel(%arg0: i32, %arg1: i32, %arg2: memref<512x147xbf16, #tpu.memory_space<vmem>>, %arg3: memref<147x128xbf16, #tpu.memory_space<vmem>>, %arg4: memref<1x128xf32, #tpu.memory_space<vmem>>, %arg5: memref<512x128xbf16, #tpu.memory_space<vmem>>) attributes {dimension_semantics = [#tpu.dimension_semantics<parallel>, #tpu.dimension_semantics<parallel>], iteration_bounds = array<i64: 1, 1>, scalar_prefetch = 0 : i64, scratch_operands = 0 : i64, tpu.core_type = #tpu.core_type<tc>, window_params = [{transform_indices = @transform_0, window_bounds = array<i64: 512, 147>}, {transform_indices = @transform_1, window_bounds = array<i64: 147, 128>}, {transform_indices = @transform_2, window_bounds = array<i64: 1, 128>}, {transform_indices = @transform_3, window_bounds = array<i64: 512, 128>}]} {
    %c0 = arith.constant 0 : index
    %c0_0 = arith.constant 0 : index
    %0 = vector.load %arg2[%c0, %c0_0] : memref<512x147xbf16, #tpu.memory_space<vmem>>, vector<512x147xbf16>
    %c0_1 = arith.constant 0 : index
    %c0_2 = arith.constant 0 : index
    %1 = vector.load %arg3[%c0_1, %c0_2] : memref<147x128xbf16, #tpu.memory_space<vmem>>, vector<147x128xbf16>
    %cst = arith.constant dense<0.000000e+00> : vector<512x128xf32>
    %2 = tpu.matmul %0, %1, %cst {dimension_numbers = #tpu.dot_dimension_numbers<[1], [0], [0], [1], [0, 0, 1, 1], [], []>} : vector<512x147xbf16>, vector<147x128xbf16>, vector<512x128xf32> -> vector<512x128xf32>
    %c0_3 = arith.constant 0 : index
    %c0_4 = arith.constant 0 : index
    %3 = vector.load %arg4[%c0_3, %c0_4] : memref<1x128xf32, #tpu.memory_space<vmem>>, vector<1x128xf32>
    %4 = vector.broadcast %3 : vector<1x128xf32> to vector<512x128xf32>
    %5 = arith.addf %2, %4 : vector<512x128xf32>
    %cst_5 = arith.constant 0.000000e+00 : f32
    %6 = vector.broadcast %cst_5 : f32 to vector<512x128xf32>
    %7 = arith.maximumf %5, %6 : vector<512x128xf32>
    %8 = arith.truncf %7 : vector<512x128xf32> to vector<512x128xbf16>
    %c0_6 = arith.constant 0 : index
    %c0_7 = arith.constant 0 : index
    %9 = vector.load %arg5[%c0_6, %c0_7] : memref<512x128xbf16, #tpu.memory_space<vmem>>, vector<512x128xbf16>
    tpu.vector_store %arg5[%c0_6, %c0_7], %8 {strides = array<i32>} : memref<512x128xbf16, #tpu.memory_space<vmem>>, vector<512x128xbf16>,
    return
  }
  func.func @transform_0(%arg0: i32, %arg1: i32) -> (i32, i32) {
    %c0_i32 = arith.constant 0 : i32
    %c0_i32_0 = arith.constant 0 : i32
    return %arg0, %c0_i32 : i32, i32
  }
  func.func @transform_1(%arg0: i32, %arg1: i32) -> (i32, i32) {
    %c0_i32 = arith.constant 0 : i32
    %c0_i32_0 = arith.constant 0 : i32
    return %c0_i32, %arg1 : i32, i32
  }
  func.func @transform_2(%arg0: i32, %arg1: i32) -> (i32, i32) {
    %c0_i32 = arith.constant 0 : i32
    %c0_i32_0 = arith.constant 0 : i32
    return %c0_i32, %arg1 : i32, i32
  }
  func.func @transform_3(%arg0: i32, %arg1: i32) -> (i32, i32) {
    %c0_i32 = arith.constant 0 : i32
    return %arg0, %arg1 : i32, i32
  }
}

</mosaic_0001>

<llo_original>
// kernel: tpu_custom_call.1
$region0: #{tpu_custom_call.1}
  #allocation0 [shape = 'u32[]', space=smem, size = 0x4, offset = 0x4, fixed_abs, tag = 'smem constant byte address 0x4 - core index']
  #allocation1 [shape = 'u32[72,128]{1,0:T(1,128)}', space=vmem, size = 0x9000, scoped, tag = 'internal scratch']
  %s0 = inlined_call_operand.vmem [shape: bf16[512,147], index: 0, kind: input, shape index: {}]
  %s1 = inlined_call_operand.vmem [shape: bf16[147,128], index: 1, kind: input, shape index: {}]
  %s2 = inlined_call_operand.vmem [shape: f32[1,128], index: 2, kind: input, shape index: {}]
  %s3 = inlined_call_operand.hbm [shape: bf16[512,128], index: 3, kind: output, shape index: {}]
  %s4 = sld [smem:[#allocation0]]
  $region22: #{tpu_custom_call.1} parent=0
    _
  %s6 = ssub.s32 1, %s4
  %s7 = scalar_select 0, %s6, %s4
  $region1: #{tpu_custom_call.1} parent=0
    #allocation2 [shape = 'u8[131072]{0}', space=vmem, size = 0x20000, scoped, tag = 'output window, operand 0, single buffered']
    #allocation3 [shape = 's32[1]{0}', space=sflag, size = 0x4, scoped, tag = 'scoped memory for tpu_custom_call.1']
    %8 = vsyncpa [#allocation3], 0
    // Predicated region
    $region2: #{tpu_custom_call.1} parent=1 // pred_check
      _
    $region3: #{tpu_custom_call.1} parent=1 // pred_check_branch
      %10 = sbr.rel (0) target = $region5
    $region4: #{tpu_custom_call.1} parent=1 // pred_region
      _
    $region5: #{tpu_custom_call.1} parent=1 // pred_fallthru
      _
    // Predicated region
    $region6: #{tpu_custom_call.1} parent=1 // pred_check
      _
    $region7: #{tpu_custom_call.1} parent=1 // pred_check_branch
      %12 = sbr.rel (0) target = $region9
    $region8: #{tpu_custom_call.1} parent=1 // pred_region
      _
    $region9: #{tpu_custom_call.1} parent=1 // pred_fallthru
      _
    // Predicated region
    $region10: #{tpu_custom_call.1} parent=1 // pred_check
      _
    $region11: #{tpu_custom_call.1} parent=1 // pred_check_branch
      %14 = sbr.rel (0) target = $region13
    $region12: #{tpu_custom_call.1} parent=1 // pred_region
      _
    $region13: #{tpu_custom_call.1} parent=1 // pred_fallthru
      _
    %v16 = vld [vmem:[%s0] sm:$0xff]
    %v17 = vld [vmem:[%s0 + $0x8] sm:$0xff]
    %v18 = vld [vmem:[%s0 + $0x10] sm:$0xff]
    %v19 = vld [vmem:[%s0 + $0x18] sm:$0xff]
    %v20 = vld [vmem:[%s0 + $0x20] sm:$0xff]
    %v21 = vld [vmem:[%s0 + $0x28] sm:$0xff]
    %v22 = vld [vmem:[%s0 + $0x30] sm:$0xff]
    %v23 = vld [vmem:[%s0 + $0x38] sm:$0xff]
    %v24 = vld [vmem:[%s0 + $0x40] sm:$0xff]
    %v25 = vld [vmem:[%s0 + $0x48] sm:$0xff]
    %v26 = vld [vmem:[%s0 + $0x50] sm:$0xff]
    %v27 = vld [vmem:[%s0 + $0x58] sm:$0xff]
    %v28 = vld [vmem:[%s0 + $0x60] sm:$0xff]
    %v29 = vld [vmem:[%s0 + $0x68] sm:$0xff]
    %v30 = vld [vmem:[%s0 + $0x70] sm:$0xff]
    %v31 = vld [vmem:[%s0 + $0x78] sm:$0xff]
    %v32 = vld [vmem:[%s0 + $0x80] sm:$0xff]
    %v33 = vld [vmem:[%s0 + $0x88] sm:$0xff]
    %v34 = vld [vmem:[%s0 + $0x90] sm:$0xff]
    %v35 = vld [vmem:[%s0 + $0x98] sm:$0xff]
    %v36 = vld [vmem:[%s0 + $0xa0] sm:$0xff]
    %v37 = vld [vmem:[%s0 + $0xa8] sm:$0xff]
    %v38 = vld [vmem:[%s0 + $0xb0] sm:$0xff]
    %v39 = vld [vmem:[%s0 + $0xb8] sm:$0xff]
    %v40 = vld [vmem:[%s0 + $0xc0] sm:$0xff]
    %v41 = vld [vmem:[%s0 + $0xc8] sm:$0xff]
    %v42 = vld [vmem:[%s0 + $0xd0] sm:$0xff]
    %v43 = vld [vmem:[%s0 + $0xd8] sm:$0xff]
    %v44 = vld [vmem:[%s0 + $0xe0] sm:$0xff]
    %v45 = vld [vmem:[%s0 + $0xe8] sm:$0xff]
    %v46 = vld [vmem:[%s0 + $0xf0] sm:$0xff]
    %v47 = vld [vmem:[%s0 + $0xf8] sm:$0xff]
    %v48 = vld [vmem:[%s0 + $0x100] sm:$0xff]
    %v49 = vld [vmem:[%s0 + $0x108] sm:$0xff]
    %v50 = vld [vmem:[%s0 + $0x110] sm:$0xff]
    %v51 = vld [vmem:[%s0 + $0x118] sm:$0xff]
    %v52 = vld [vmem:[%s0 + $0x120] sm:$0xff]
    %v53 = vld [vmem:[%s0 + $0x128] sm:$0xff]
    %v54 = vld [vmem:[%s0 + $0x130] sm:$0xff]
    %v55 = vld [vmem:[%s0 + $0x138] sm:$0xff]
    %v56 = vld [vmem:[%s0 + $0x140] sm:$0xff]
    %v57 = vld [vmem:[%s0 + $0x148] sm:$0xff]
    %v58 = vld [vmem:[%s0 + $0x150] sm:$0xff]
    %v59 = vld [vmem:[%s0 + $0x158] sm:$0xff]
    %v60 = vld [vmem:[%s0 + $0x160] sm:$0xff]
    %v61 = vld [vmem:[%s0 + $0x168] sm:$0xff]
    %v62 = vld [vmem:[%s0 + $0x170] sm:$0xff]
    %v63 = vld [vmem:[%s0 + $0x178] sm:$0xff]
    %v64 = vld [vmem:[%s0 + $0x180] sm:$0xff]
    %v65 = vld [vmem:[%s0 + $0x188] sm:$0xff]
    %v66 = vld [vmem:[%s0 + $0x190] sm:$0xff]
    %v67 = vld [vmem:[%s0 + $0x198] sm:$0xff]
    %v68 = vld [vmem:[%s0 + $0x1a0] sm:$0xff]
    %v69 = vld [vmem:[%s0 + $0x1a8] sm:$0xff]
    %v70 = vld [vmem:[%s0 + $0x1b0] sm:$0xff]
    %v71 = vld [vmem:[%s0 + $0x1b8] sm:$0xff]
    %v72 = vld [vmem:[%s0 + $0x1c0] sm:$0xff]
    %v73 = vld [vmem:[%s0 + $0x1c8] sm:$0xff]
    %v74 = vld [vmem:[%s0 + $0x1d0] sm:$0xff]
    %v75 = vld [vmem:[%s0 + $0x1d8] sm:$0xff]
    %v76 = vld [vmem:[%s0 + $0x1e0] sm:$0xff]
    %v77 = vld [vmem:[%s0 + $0x1e8] sm:$0xff]
    %v78 = vld [vmem:[%s0 + $0x1f0] sm:$0xff]
    %v79 = vld [vmem:[%s0 + $0x1f8] sm:$0xff]
    %v80 = vld [vmem:[%s1] sm:$0xf]
    %v81 = vld [vmem:[%s1 + $0x4] sm:$0xf]
    %v82 = vld [vmem:[%s1 + $0x8] sm:$0xf]
    %v83 = vld [vmem:[%s1 + $0xc] sm:$0xf]
    %v84 = vld [vmem:[%s1 + $0x10] sm:$0xf]
    %v85 = vld [vmem:[%s1 + $0x14] sm:$0xf]
    %v86 = vld [vmem:[%s1 + $0x18] sm:$0xf]
    %v87 = vld [vmem:[%s1 + $0x1c] sm:$0xf]
    %v88 = vld [vmem:[%s1 + $0x20] sm:$0xf]
    %v89 = vld [vmem:[%s1 + $0x24] sm:$0xf]
    %v90 = vld [vmem:[%s1 + $0x28] sm:$0xf]
    %v91 = vld [vmem:[%s1 + $0x2c] sm:$0xf]
    %v92 = vld [vmem:[%s1 + $0x30] sm:$0xf]
    %v93 = vld [vmem:[%s1 + $0x34] sm:$0xf]
    %v94 = vld [vmem:[%s1 + $0x38] sm:$0xf]
    %v95 = vld [vmem:[%s1 + $0x3c] sm:$0xf]
    %v96 = vld [vmem:[%s1 + $0x40] sm:$0xf]
    %v97 = vld [vmem:[%s1 + $0x44] sm:$0xf]
    %v98 = vld [vmem:[%s1 + $0x48] sm:$0x3]
    %v99 = vld [vmem:[%s2] sm:$0x1]
    %v101 = vperm.slane %v99, 0
    %v167 = vunpack.c.l.b16 %v16
    %v168 = vunpack.c.h.b16 %v16
    %v169 = vunpack.c.l.b16 %v17
    %v170 = vunpack.c.h.b16 %v17
    %v171 = vunpack.c.l.b16 %v18
    %v172 = vunpack.c.h.b16 %v18
    %v173 = vunpack.c.l.b16 %v19
    %v174 = vunpack.c.h.b16 %v19
    %v175 = vunpack.c.l.b16 %v20
    %v176 = vunpack.c.h.b16 %v20
    %v177 = vunpack.c.l.b16 %v21
    %v178 = vunpack.c.h.b16 %v21
    %v179 = vunpack.c.l.b16 %v22
    %v180 = vunpack.c.h.b16 %v22
    %v181 = vunpack.c.l.b16 %v23
    %v182 = vunpack.c.h.b16 %v23
    %v183 = vunpack.c.l.b16 %v24
    %v184 = vunpack.c.h.b16 %v24
    %v185 = vunpack.c.l.b16 %v25
    %v186 = vunpack.c.h.b16 %v25
    %v187 = vunpack.c.l.b16 %v26
    %v188 = vunpack.c.h.b16 %v26
    %v189 = vunpack.c.l.b16 %v27
    %v190 = vunpack.c.h.b16 %v27
    %v191 = vunpack.c.l.b16 %v28
    %v192 = vunpack.c.h.b16 %v28
    %v193 = vunpack.c.l.b16 %v29
    %v194 = vunpack.c.h.b16 %v29
    %v195 = vunpack.c.l.b16 %v30
    %v196 = vunpack.c.h.b16 %v30
    %v197 = vunpack.c.l.b16 %v31
    %v198 = vunpack.c.h.b16 %v31
    %v199 = vunpack.c.l.b16 %v32
    %v200 = vunpack.c.h.b16 %v32
    %v201 = vunpack.c.l.b16 %v33
    %v202 = vunpack.c.h.b16 %v33
    %v203 = vunpack.c.l.b16 %v34
    %v204 = vunpack.c.h.b16 %v34
    %v205 = vunpack.c.l.b16 %v35
    %v206 = vunpack.c.h.b16 %v35
    %v207 = vunpack.c.l.b16 %v36
    %v208 = vunpack.c.h.b16 %v36
    %v209 = vunpack.c.l.b16 %v37
    %v210 = vunpack.c.h.b16 %v37
    %v211 = vunpack.c.l.b16 %v38
    %v212 = vunpack.c.h.b16 %v38
    %v213 = vunpack.c.l.b16 %v39
    %v214 = vunpack.c.h.b16 %v39
    %v215 = vunpack.c.l.b16 %v40
    %v216 = vunpack.c.h.b16 %v40
    %v217 = vunpack.c.l.b16 %v41
    %v218 = vunpack.c.h.b16 %v41
    %v219 = vunpack.c.l.b16 %v42
    %v220 = vunpack.c.h.b16 %v42
    %v221 = vunpack.c.l.b16 %v43
    %v222 = vunpack.c.h.b16 %v43
    %v223 = vunpack.c.l.b16 %v44
    %v224 = vunpack.c.h.b16 %v44
    %v225 = vunpack.c.l.b16 %v45
    %v226 = vunpack.c.h.b16 %v45
    %v227 = vunpack.c.l.b16 %v46
    %v228 = vunpack.c.h.b16 %v46
    %v229 = vunpack.c.l.b16 %v47
    %v230 = vunpack.c.h.b16 %v47
    %v231 = vunpack.c.l.b16 %v48
    %v232 = vunpack.c.h.b16 %v48
    %v233 = vunpack.c.l.b16 %v49
    %v234 = vunpack.c.h.b16 %v49
    %v235 = vunpack.c.l.b16 %v50
    %v236 = vunpack.c.h.b16 %v50
    %v237 = vunpack.c.l.b16 %v51
    %v238 = vunpack.c.h.b16 %v51
    %v239 = vunpack.c.l.b16 %v52
    %v240 = vunpack.c.h.b16 %v52
    %v241 = vunpack.c.l.b16 %v53
    %v242 = vunpack.c.h.b16 %v53
    %v243 = vunpack.c.l.b16 %v54
    %v244 = vunpack.c.h.b16 %v54
    %v245 = vunpack.c.l.b16 %v55
    %v246 = vunpack.c.h.b16 %v55
    %v247 = vunpack.c.l.b16 %v56
    %v248 = vunpack.c.h.b16 %v56
    %v249 = vunpack.c.l.b16 %v57
    %v250 = vunpack.c.h.b16 %v57
    %v251 = vunpack.c.l.b16 %v58
    %v252 = vunpack.c.h.b16 %v58
    %v253 = vunpack.c.l.b16 %v59
    %v254 = vunpack.c.h.b16 %v59
    %v255 = vunpack.c.l.b16 %v60
    %v256 = vunpack.c.h.b16 %v60
    %v257 = vunpack.c.l.b16 %v61
    %v258 = vunpack.c.h.b16 %v61
    %v259 = vunpack.c.l.b16 %v62
    %v260 = vunpack.c.h.b16 %v62
    %v261 = vunpack.c.l.b16 %v63
    %v262 = vunpack.c.h.b16 %v63
    %v263 = vunpack.c.l.b16 %v64
    %v264 = vunpack.c.h.b16 %v64
    %v265 = vunpack.c.l.b16 %v65
    %v266 = vunpack.c.h.b16 %v65
    %v267 = vunpack.c.l.b16 %v66
    %v268 = vunpack.c.h.b16 %v66
    %v269 = vunpack.c.l.b16 %v67
    %v270 = vunpack.c.h.b16 %v67
    %v271 = vunpack.c.l.b16 %v68
    %v272 = vunpack.c.h.b16 %v68
    %v273 = vunpack.c.l.b16 %v69
    %v274 = vunpack.c.h.b16 %v69
    %v275 = vunpack.c.l.b16 %v70
    %v276 = vunpack.c.h.b16 %v70
    %v277 = vunpack.c.l.b16 %v71
    %v278 = vunpack.c.h.b16 %v71
    %v279 = vunpack.c.l.b16 %v72
    %v280 = vunpack.c.h.b16 %v72
    %v281 = vunpack.c.l.b16 %v73
    %v282 = vunpack.c.h.b16 %v73
    %v283 = vunpack.c.l.b16 %v74
    %v284 = vunpack.c.h.b16 %v74
    %v285 = vunpack.c.l.b16 %v75
    %v286 = vunpack.c.h.b16 %v75
    %v287 = vunpack.c.l.b16 %v76
    %v288 = vunpack.c.h.b16 %v76
    %v289 = vunpack.c.l.b16 %v77
    %v290 = vunpack.c.h.b16 %v77
    %v291 = vunpack.c.l.b16 %v78
    %v292 = vunpack.c.h.b16 %v78
    %v293 = vunpack.c.l.b16 %v79
    %v294 = vunpack.c.h.b16 %v79
    %v295 = vpack.c.b16 %v169, %v167
    %v296 = vpack.c.b16 %v170, %v168
    %v297 = vpack.c.b16 %v173, %v171
    %v298 = vpack.c.b16 %v174, %v172
    %v299 = vpack.c.b16 %v177, %v175
    %v300 = vpack.c.b16 %v178, %v176
    %v301 = vpack.c.b16 %v181, %v179
    %v302 = vpack.c.b16 %v182, %v180
    %v303 = vpack.c.b16 %v185, %v183
    %v304 = vpack.c.b16 %v186, %v184
    %v305 = vpack.c.b16 %v189, %v187
    %v306 = vpack.c.b16 %v190, %v188
    %v307 = vpack.c.b16 %v193, %v191
    %v308 = vpack.c.b16 %v194, %v192
    %v309 = vpack.c.b16 %v197, %v195
    %v310 = vpack.c.b16 %v198, %v196
    %v311 = vpack.c.b16 %v201, %v199
    %v312 = vpack.c.b16 %v202, %v200
    %v313 = vpack.c.b16 %v205, %v203
    %v314 = vpack.c.b16 %v206, %v204
    %v315 = vpack.c.b16 %v209, %v207
    %v316 = vpack.c.b16 %v210, %v208
    %v317 = vpack.c.b16 %v213, %v211
    %v318 = vpack.c.b16 %v214, %v212
    %v319 = vpack.c.b16 %v217, %v215
    %v320 = vpack.c.b16 %v218, %v216
    %v321 = vpack.c.b16 %v221, %v219
    %v322 = vpack.c.b16 %v222, %v220
    %v323 = vpack.c.b16 %v225, %v223
    %v324 = vpack.c.b16 %v226, %v224
    %v325 = vpack.c.b16 %v229, %v227
    %v326 = vpack.c.b16 %v230, %v228
    %v327 = vpack.c.b16 %v233, %v231
    %v328 = vpack.c.b16 %v234, %v232
    %v329 = vpack.c.b16 %v237, %v235
    %v330 = vpack.c.b16 %v238, %v236
    %v331 = vpack.c.b16 %v241, %v239
    %v332 = vpack.c.b16 %v242, %v240
    %v333 = vpack.c.b16 %v245, %v243
    %v334 = vpack.c.b16 %v246, %v244
    %v335 = vpack.c.b16 %v249, %v247
    %v336 = vpack.c.b16 %v250, %v248
    %v337 = vpack.c.b16 %v253, %v251
    %v338 = vpack.c.b16 %v254, %v252
    %v339 = vpack.c.b16 %v257, %v255
    %v340 = vpack.c.b16 %v258, %v256
    %v341 = vpack.c.b16 %v261, %v259
    %v342 = vpack.c.b16 %v262, %v260
    %v343 = vpack.c.b16 %v265, %v263
    %v344 = vpack.c.b16 %v266, %v264
    %v345 = vpack.c.b16 %v269, %v267
    %v346 = vpack.c.b16 %v270, %v268
    %v347 = vpack.c.b16 %v273, %v271
    %v348 = vpack.c.b16 %v274, %v272
    %v349 = vpack.c.b16 %v277, %v275
    %v350 = vpack.c.b16 %v278, %v276
    %v351 = vpack.c.b16 %v281, %v279
    %v352 = vpack.c.b16 %v282, %v280
    %v353 = vpack.c.b16 %v285, %v283
    %v354 = vpack.c.b16 %v286, %v284
    %v355 = vpack.c.b16 %v289, %v287
    %v356 = vpack.c.b16 %v290, %v288
    %v357 = vpack.c.b16 %v293, %v291
    %v358 = vpack.c.b16 %v294, %v292
    %v410 = vunpack.c.l.b16 %v80
    %v411 = vunpack.c.l.b16 %v81
    %v412 = vunpack.c.l.b16 %v82
    %v413 = vunpack.c.l.b16 %v83
    %v414 = vunpack.c.l.b16 %v84
    %v415 = vunpack.c.l.b16 %v85
    %v416 = vunpack.c.l.b16 %v86
    %v417 = vunpack.c.l.b16 %v87
    %v418 = vunpack.c.l.b16 %v88
    %v419 = vunpack.c.l.b16 %v89
    %v420 = vunpack.c.l.b16 %v90
    %v421 = vunpack.c.l.b16 %v91
    %v422 = vunpack.c.l.b16 %v92
    %v423 = vunpack.c.l.b16 %v93
    %v424 = vunpack.c.l.b16 %v94
    %v425 = vunpack.c.l.b16 %v95
    %v426 = vunpack.c.l.b16 %v96
    %v427 = vunpack.c.l.b16 %v97
    %v428 = vunpack.c.l.b16 %v98
    %v429 = vpack.c.b16 %v411, %v410
    %v430 = vpack.c.b16 %v413, %v412
    %v431 = vpack.c.b16 %v415, %v414
    %v432 = vpack.c.b16 %v417, %v416
    %v433 = vpack.c.b16 %v419, %v418
    %v434 = vpack.c.b16 %v421, %v420
    %v435 = vpack.c.b16 %v423, %v422
    %v436 = vpack.c.b16 %v425, %v424
    %v437 = vpack.c.b16 %v427, %v426
    %v438 = vpack.c.b16 %v428, %v428
    %vm448 = vcmask 154624
    %v450 = vsel %vm448, %v296, 0
    %v453 = vsel %vm448, %v298, 0
    %v456 = vsel %vm448, %v300, 0
    %v459 = vsel %vm448, %v302, 0
    %v462 = vsel %vm448, %v304, 0
    %v465 = vsel %vm448, %v306, 0
    %v468 = vsel %vm448, %v308, 0
    %v471 = vsel %vm448, %v310, 0
    %v474 = vsel %vm448, %v312, 0
    %v477 = vsel %vm448, %v314, 0
    %v480 = vsel %vm448, %v316, 0
    %v483 = vsel %vm448, %v318, 0
    %v486 = vsel %vm448, %v320, 0
    %v489 = vsel %vm448, %v322, 0
    %v492 = vsel %vm448, %v324, 0
    %v495 = vsel %vm448, %v326, 0
    %v498 = vsel %vm448, %v328, 0
    %v501 = vsel %vm448, %v330, 0
    %v504 = vsel %vm448, %v332, 0
    %v507 = vsel %vm448, %v334, 0
    %v510 = vsel %vm448, %v336, 0
    %v513 = vsel %vm448, %v338, 0
    %v516 = vsel %vm448, %v340, 0
    %v519 = vsel %vm448, %v342, 0
    %v522 = vsel %vm448, %v344, 0
    %v525 = vsel %vm448, %v346, 0
    %v528 = vsel %vm448, %v348, 0
    %v531 = vsel %vm448, %v350, 0
    %v534 = vsel %vm448, %v352, 0
    %v537 = vsel %vm448, %v354, 0
    %v540 = vsel %vm448, %v356, 0
    %v543 = vsel %vm448, %v358, 0
    %vm545 = vcmask 1040384
    %vm546 = vcmask 1041408
    %v547 = vsel %vm545, 4294967295, 65535
    %v548 = vsel %vm546, %v547, 0
    %v550 = vand.u32 %v438, %v548
    %552 = vmatpush.bf16.msra.mxu0 %v436
    %553 = vmatpush.bf16.msra.mxu0 %v435
    %554 = vmatpush.bf16.msra.mxu0 %v434
    %555 = vmatpush.bf16.msra.mxu0 %v433
    %556 = vmatpush.bf16.msra.mxu0 %v432
    %557 = vmatpush.bf16.msra.mxu0 %v431
    %558 = vmatpush.bf16.msra.mxu0 %v430
    %559 = vmatpush.bf16.msra.mxu0 %v429
    %560 = vmatmul.bf16.gmra.mxu0 %v295
    %v561 = vpop.f32.mrf.mxu0
    %v562 = vadd.f32 %v101, %v561
    %v563 = vpop.f32.mrf.mxu0
    %v564 = vadd.f32 %v101, %v563
    %565 = vmatmul.bf16.gmra.mxu0 %v297
    %v566 = vpop.f32.mrf.mxu0
    %v567 = vadd.f32 %v101, %v566
    %v568 = vpop.f32.mrf.mxu0
    %v569 = vadd.f32 %v101, %v568
    %570 = vmatmul.bf16.gmra.mxu0 %v299
    %v571 = vpop.f32.mrf.mxu0
    %v572 = vadd.f32 %v101, %v571
    %v573 = vpop.f32.mrf.mxu0
    %v574 = vadd.f32 %v101, %v573
    %575 = vmatmul.bf16.gmra.mxu0 %v301
    %v576 = vpop.f32.mrf.mxu0
    %v577 = vadd.f32 %v101, %v576
    %v578 = vpop.f32.mrf.mxu0
    %v579 = vadd.f32 %v101, %v578
    %580 = vmatmul.bf16.gmra.mxu0 %v303
    %v581 = vpop.f32.mrf.mxu0
    %v582 = vadd.f32 %v101, %v581
    %v583 = vpop.f32.mrf.mxu0
    %v584 = vadd.f32 %v101, %v583
    %585 = vmatmul.bf16.gmra.mxu0 %v305
    %v586 = vpop.f32.mrf.mxu0
    %v587 = vadd.f32 %v101, %v586
    %v588 = vpop.f32.mrf.mxu0
    %v589 = vadd.f32 %v101, %v588
    %590 = vmatmul.bf16.gmra.mxu0 %v307
    %v591 = vpop.f32.mrf.mxu0
    %v592 = vadd.f32 %v101, %v591
    %v593 = vpop.f32.mrf.mxu0
    %v594 = vadd.f32 %v101, %v593
    %595 = vmatmul.bf16.gmra.mxu0 %v309
    %v596 = vpop.f32.mrf.mxu0
    %v597 = vadd.f32 %v101, %v596
    %v598 = vpop.f32.mrf.mxu0
    %v599 = vadd.f32 %v101, %v598
    %600 = vmatmul.bf16.gmra.mxu0 %v311
    %v601 = vpop.f32.mrf.mxu0
    %v602 = vadd.f32 %v101, %v601
    %v603 = vpop.f32.mrf.mxu0
    %v604 = vadd.f32 %v101, %v603
    %605 = vmatmul.bf16.gmra.mxu0 %v313
    %v606 = vpop.f32.mrf.mxu0
    %v607 = vadd.f32 %v101, %v606
    %v608 = vpop.f32.mrf.mxu0
    %v609 = vadd.f32 %v101, %v608
    %610 = vmatmul.bf16.gmra.mxu0 %v315
    %v611 = vpop.f32.mrf.mxu0
    %v612 = vadd.f32 %v101, %v611
    %v613 = vpop.f32.mrf.mxu0
    %v614 = vadd.f32 %v101, %v613
    %615 = vmatmul.bf16.gmra.mxu0 %v317
    %v616 = vpop.f32.mrf.mxu0
    %v617 = vadd.f32 %v101, %v616
    %v618 = vpop.f32.mrf.mxu0
    %v619 = vadd.f32 %v101, %v618
    %620 = vmatmul.bf16.gmra.mxu0 %v319
    %v621 = vpop.f32.mrf.mxu0
    %v622 = vadd.f32 %v101, %v621
    %v623 = vpop.f32.mrf.mxu0
    %v624 = vadd.f32 %v101, %v623
    %625 = vmatmul.bf16.gmra.mxu0 %v321
    %v626 = vpop.f32.mrf.mxu0
    %v627 = vadd.f32 %v101, %v626
    %v628 = vpop.f32.mrf.mxu0
    %v629 = vadd.f32 %v101, %v628
    %630 = vmatmul.bf16.gmra.mxu0 %v323
    %v631 = vpop.f32.mrf.mxu0
    %v632 = vadd.f32 %v101, %v631
    %v633 = vpop.f32.mrf.mxu0
    %v634 = vadd.f32 %v101, %v633
    %635 = vmatmul.bf16.gmra.mxu0 %v325
    %v636 = vpop.f32.mrf.mxu0
    %v637 = vadd.f32 %v101, %v636
    %v638 = vpop.f32.mrf.mxu0
    %v639 = vadd.f32 %v101, %v638
    %640 = vmatmul.bf16.gmra.mxu0 %v327
    %v641 = vpop.f32.mrf.mxu0
    %v642 = vadd.f32 %v101, %v641
    %v643 = vpop.f32.mrf.mxu0
    %v644 = vadd.f32 %v101, %v643
    %645 = vmatmul.bf16.gmra.mxu0 %v329
    %v646 = vpop.f32.mrf.mxu0
    %v647 = vadd.f32 %v101, %v646
    %v648 = vpop.f32.mrf.mxu0
    %v649 = vadd.f32 %v101, %v648
    %650 = vmatmul.bf16.gmra.mxu0 %v331
    %v651 = vpop.f32.mrf.mxu0
    %v652 = vadd.f32 %v101, %v651
    %v653 = vpop.f32.mrf.mxu0
    %v654 = vadd.f32 %v101, %v653
    %655 = vmatmul.bf16.gmra.mxu0 %v333
    %v656 = vpop.f32.mrf.mxu0
    %v657 = vadd.f32 %v101, %v656
    %v658 = vpop.f32.mrf.mxu0
    %v659 = vadd.f32 %v101, %v658
    %660 = vmatmul.bf16.gmra.mxu0 %v335
    %v661 = vpop.f32.mrf.mxu0
    %v662 = vadd.f32 %v101, %v661
    %v663 = vpop.f32.mrf.mxu0
    %v664 = vadd.f32 %v101, %v663
    %665 = vmatmul.bf16.gmra.mxu0 %v337
    %v666 = vpop.f32.mrf.mxu0
    %v667 = vadd.f32 %v101, %v666
    %v668 = vpop.f32.mrf.mxu0
    %v669 = vadd.f32 %v101, %v668
    %670 = vmatmul.bf16.gmra.mxu0 %v339
    %v671 = vpop.f32.mrf.mxu0
    %v672 = vadd.f32 %v101, %v671
    %v673 = vpop.f32.mrf.mxu0
    %v674 = vadd.f32 %v101, %v673
    %675 = vmatmul.bf16.gmra.mxu0 %v341
    %v676 = vpop.f32.mrf.mxu0
    %v677 = vadd.f32 %v101, %v676
    %v678 = vpop.f32.mrf.mxu0
    %v679 = vadd.f32 %v101, %v678
    %680 = vmatmul.bf16.gmra.mxu0 %v343
    %v681 = vpop.f32.mrf.mxu0
    %v682 = vadd.f32 %v101, %v681
    %v683 = vpop.f32.mrf.mxu0
    %v684 = vadd.f32 %v101, %v683
    %685 = vmatmul.bf16.gmra.mxu0 %v345
    %v686 = vpop.f32.mrf.mxu0
    %v687 = vadd.f32 %v101, %v686
    %v688 = vpop.f32.mrf.mxu0
    %v689 = vadd.f32 %v101, %v688
    %690 = vmatmul.bf16.gmra.mxu0 %v347
    %v691 = vpop.f32.mrf.mxu0
    %v692 = vadd.f32 %v101, %v691
    %v693 = vpop.f32.mrf.mxu0
    %v694 = vadd.f32 %v101, %v693
    %695 = vmatmul.bf16.gmra.mxu0 %v349
    %v696 = vpop.f32.mrf.mxu0
    %v697 = vadd.f32 %v101, %v696
    %v698 = vpop.f32.mrf.mxu0
    %v699 = vadd.f32 %v101, %v698
    %700 = vmatmul.bf16.gmra.mxu0 %v351
    %v701 = vpop.f32.mrf.mxu0
    %v702 = vadd.f32 %v101, %v701
    %v703 = vpop.f32.mrf.mxu0
    %v704 = vadd.f32 %v101, %v703
    %705 = vmatmul.bf16.gmra.mxu0 %v353
    %v706 = vpop.f32.mrf.mxu0
    %v707 = vadd.f32 %v101, %v706
    %v708 = vpop.f32.mrf.mxu0
    %v709 = vadd.f32 %v101, %v708
    %710 = vmatmul.bf16.gmra.mxu0 %v355
    %v711 = vpop.f32.mrf.mxu0
    %v712 = vadd.f32 %v101, %v711
    %v713 = vpop.f32.mrf.mxu0
    %v714 = vadd.f32 %v101, %v713
    %715 = vmatmul.bf16.gmra.mxu0 %v357
    %v716 = vpop.f32.mrf.mxu0
    %v717 = vadd.f32 %v101, %v716
    %v718 = vpop.f32.mrf.mxu0
    %v719 = vadd.f32 %v101, %v718
    %720 = vdwg.mxu0
    %721 = vmatpush.bf16.msra.mxu0 0
    %722 = vmatpush.bf16.msra.mxu0 0
    %723 = vmatpush.bf16.msra.mxu0 0
    %724 = vmatpush.bf16.msra.mxu0 0
    %725 = vmatpush.bf16.msra.mxu0 0
    %726 = vmatpush.bf16.msra.mxu0 0
    %727 = vmatpush.bf16.msra.mxu0 %v550
    %728 = vmatpush.bf16.msra.mxu0 %v437
    %729 = vmatmul.bf16.gmra.mxu0 %v450
    %v730 = vpop.f32.mrf.mxu0
    %v731 = vadd.f32 %v562, %v730
    %v732 = vpop.f32.mrf.mxu0
    %v733 = vadd.f32 %v564, %v732
    %734 = vmatmul.bf16.gmra.mxu0 %v453
    %v735 = vpop.f32.mrf.mxu0
    %v736 = vadd.f32 %v567, %v735
    %v737 = vpop.f32.mrf.mxu0
    %v738 = vadd.f32 %v569, %v737
    %739 = vmatmul.bf16.gmra.mxu0 %v456
    %v740 = vpop.f32.mrf.mxu0
    %v741 = vadd.f32 %v572, %v740
    %v742 = vpop.f32.mrf.mxu0
    %v743 = vadd.f32 %v574, %v742
    %744 = vmatmul.bf16.gmra.mxu0 %v459
    %v745 = vpop.f32.mrf.mxu0
    %v746 = vadd.f32 %v577, %v745
    %v747 = vpop.f32.mrf.mxu0
    %v748 = vadd.f32 %v579, %v747
    %749 = vmatmul.bf16.gmra.mxu0 %v462
    %v750 = vpop.f32.mrf.mxu0
    %v751 = vadd.f32 %v582, %v750
    %v752 = vpop.f32.mrf.mxu0
    %v753 = vadd.f32 %v584, %v752
    %754 = vmatmul.bf16.gmra.mxu0 %v465
    %v755 = vpop.f32.mrf.mxu0
    %v756 = vadd.f32 %v587, %v755
    %v757 = vpop.f32.mrf.mxu0
    %v758 = vadd.f32 %v589, %v757
    %759 = vmatmul.bf16.gmra.mxu0 %v468
    %v760 = vpop.f32.mrf.mxu0
    %v761 = vadd.f32 %v592, %v760
    %v762 = vpop.f32.mrf.mxu0
    %v763 = vadd.f32 %v594, %v762
    %764 = vmatmul.bf16.gmra.mxu0 %v471
    %v765 = vpop.f32.mrf.mxu0
    %v766 = vadd.f32 %v597, %v765
    %v767 = vpop.f32.mrf.mxu0
    %v768 = vadd.f32 %v599, %v767
    %769 = vmatmul.bf16.gmra.mxu0 %v474
    %v770 = vpop.f32.mrf.mxu0
    %v771 = vadd.f32 %v602, %v770
    %v772 = vpop.f32.mrf.mxu0
    %v773 = vadd.f32 %v604, %v772
    %774 = vmatmul.bf16.gmra.mxu0 %v477
    %v775 = vpop.f32.mrf.mxu0
    %v776 = vadd.f32 %v607, %v775
    %v777 = vpop.f32.mrf.mxu0
    %v778 = vadd.f32 %v609, %v777
    %779 = vmatmul.bf16.gmra.mxu0 %v480
    %v780 = vpop.f32.mrf.mxu0
    %v781 = vadd.f32 %v612, %v780
    %v782 = vpop.f32.mrf.mxu0
    %v783 = vadd.f32 %v614, %v782
    %784 = vmatmul.bf16.gmra.mxu0 %v483
    %v785 = vpop.f32.mrf.mxu0
    %v786 = vadd.f32 %v617, %v785
    %v787 = vpop.f32.mrf.mxu0
    %v788 = vadd.f32 %v619, %v787
    %789 = vmatmul.bf16.gmra.mxu0 %v486
    %v790 = vpop.f32.mrf.mxu0
    %v791 = vadd.f32 %v622, %v790
    %v792 = vpop.f32.mrf.mxu0
    %v793 = vadd.f32 %v624, %v792
    %794 = vmatmul.bf16.gmra.mxu0 %v489
    %v795 = vpop.f32.mrf.mxu0
    %v796 = vadd.f32 %v627, %v795
    %v797 = vpop.f32.mrf.mxu0
    %v798 = vadd.f32 %v629, %v797
    %799 = vmatmul.bf16.gmra.mxu0 %v492
    %v800 = vpop.f32.mrf.mxu0
    %v801 = vadd.f32 %v632, %v800
    %v802 = vpop.f32.mrf.mxu0
    %v803 = vadd.f32 %v634, %v802
    %804 = vmatmul.bf16.gmra.mxu0 %v495
    %v805 = vpop.f32.mrf.mxu0
    %v806 = vadd.f32 %v637, %v805
    %v807 = vpop.f32.mrf.mxu0
    %v808 = vadd.f32 %v639, %v807
    %809 = vmatmul.bf16.gmra.mxu0 %v498
    %v810 = vpop.f32.mrf.mxu0
    %v811 = vadd.f32 %v642, %v810
    %v812 = vpop.f32.mrf.mxu0
    %v813 = vadd.f32 %v644, %v812
    %814 = vmatmul.bf16.gmra.mxu0 %v501
    %v815 = vpop.f32.mrf.mxu0
    %v816 = vadd.f32 %v647, %v815
    %v817 = vpop.f32.mrf.mxu0
    %v818 = vadd.f32 %v649, %v817
    %819 = vmatmul.bf16.gmra.mxu0 %v504
    %v820 = vpop.f32.mrf.mxu0
    %v821 = vadd.f32 %v652, %v820
    %v822 = vpop.f32.mrf.mxu0
    %v823 = vadd.f32 %v654, %v822
    %824 = vmatmul.bf16.gmra.mxu0 %v507
    %v825 = vpop.f32.mrf.mxu0
    %v826 = vadd.f32 %v657, %v825
    %v827 = vpop.f32.mrf.mxu0
    %v828 = vadd.f32 %v659, %v827
    %829 = vmatmul.bf16.gmra.mxu0 %v510
    %v830 = vpop.f32.mrf.mxu0
    %v831 = vadd.f32 %v662, %v830
    %v832 = vpop.f32.mrf.mxu0
    %v833 = vadd.f32 %v664, %v832
    %834 = vmatmul.bf16.gmra.mxu0 %v513
    %v835 = vpop.f32.mrf.mxu0
    %v836 = vadd.f32 %v667, %v835
    %v837 = vpop.f32.mrf.mxu0
    %v838 = vadd.f32 %v669, %v837
    %839 = vmatmul.bf16.gmra.mxu0 %v516
    %v840 = vpop.f32.mrf.mxu0
    %v841 = vadd.f32 %v672, %v840
    %v842 = vpop.f32.mrf.mxu0
    %v843 = vadd.f32 %v674, %v842
    %844 = vmatmul.bf16.gmra.mxu0 %v519
    %v845 = vpop.f32.mrf.mxu0
    %v846 = vadd.f32 %v677, %v845
    %v847 = vpop.f32.mrf.mxu0
    %v848 = vadd.f32 %v679, %v847
    %849 = vmatmul.bf16.gmra.mxu0 %v522
    %v850 = vpop.f32.mrf.mxu0
    %v851 = vadd.f32 %v682, %v850
    %v852 = vpop.f32.mrf.mxu0
    %v853 = vadd.f32 %v684, %v852
    %854 = vmatmul.bf16.gmra.mxu0 %v525
    %v855 = vpop.f32.mrf.mxu0
    %v856 = vadd.f32 %v687, %v855
    %v857 = vpop.f32.mrf.mxu0
    %v858 = vadd.f32 %v689, %v857
    %859 = vmatmul.bf16.gmra.mxu0 %v528
    %v860 = vpop.f32.mrf.mxu0
    %v861 = vadd.f32 %v692, %v860
    %v862 = vpop.f32.mrf.mxu0
    %v863 = vadd.f32 %v694, %v862
    %864 = vmatmul.bf16.gmra.mxu0 %v531
    %v865 = vpop.f32.mrf.mxu0
    %v866 = vadd.f32 %v697, %v865
    %v867 = vpop.f32.mrf.mxu0
    %v868 = vadd.f32 %v699, %v867
    %869 = vmatmul.bf16.gmra.mxu0 %v534
    %v870 = vpop.f32.mrf.mxu0
    %v871 = vadd.f32 %v702, %v870
    %v872 = vpop.f32.mrf.mxu0
    %v873 = vadd.f32 %v704, %v872
    %874 = vmatmul.bf16.gmra.mxu0 %v537
    %v875 = vpop.f32.mrf.mxu0
    %v876 = vadd.f32 %v707, %v875
    %v877 = vpop.f32.mrf.mxu0
    %v878 = vadd.f32 %v709, %v877
    %879 = vmatmul.bf16.gmra.mxu0 %v540
    %v880 = vpop.f32.mrf.mxu0
    %v881 = vadd.f32 %v712, %v880
    %v882 = vpop.f32.mrf.mxu0
    %v883 = vadd.f32 %v714, %v882
    %884 = vmatmul.bf16.gmra.mxu0 %v543
    %v885 = vpop.f32.mrf.mxu0
    %v886 = vadd.f32 %v717, %v885
    %v887 = vpop.f32.mrf.mxu0
    %v888 = vadd.f32 %v719, %v887
    %889 = vdwg.mxu0
    %v890 = vmax.f32 %v731, 0.0
    %v891 = vmax.f32 %v733, 0.0
    %v892 = vmax.f32 %v736, 0.0
    %v893 = vmax.f32 %v738, 0.0
    %v894 = vmax.f32 %v741, 0.0
    %v895 = vmax.f32 %v743, 0.0
    %v896 = vmax.f32 %v746, 0.0
    %v897 = vmax.f32 %v748, 0.0
    %v898 = vmax.f32 %v751, 0.0
    %v899 = vmax.f32 %v753, 0.0
    %v900 = vmax.f32 %v756, 0.0
    %v901 = vmax.f32 %v758, 0.0
    %v902 = vmax.f32 %v761, 0.0
    %v903 = vmax.f32 %v763, 0.0
    %v904 = vmax.f32 %v766, 0.0
    %v905 = vmax.f32 %v768, 0.0
    %v906 = vmax.f32 %v771, 0.0
    %v907 = vmax.f32 %v773, 0.0
    %v908 = vmax.f32 %v776, 0.0
    %v909 = vmax.f32 %v778, 0.0
    %v910 = vmax.f32 %v781, 0.0
    %v911 = vmax.f32 %v783, 0.0
    %v912 = vmax.f32 %v786, 0.0
    %v913 = vmax.f32 %v788, 0.0
    %v914 = vmax.f32 %v791, 0.0
    %v915 = vmax.f32 %v793, 0.0
    %v916 = vmax.f32 %v796, 0.0
    %v917 = vmax.f32 %v798, 0.0
    %v918 = vmax.f32 %v801, 0.0
    %v919 = vmax.f32 %v803, 0.0
    %v920 = vmax.f32 %v806, 0.0
    %v921 = vmax.f32 %v808, 0.0
    %v922 = vmax.f32 %v811, 0.0
    %v923 = vmax.f32 %v813, 0.0
    %v924 = vmax.f32 %v816, 0.0
    %v925 = vmax.f32 %v818, 0.0
    %v926 = vmax.f32 %v821, 0.0
    %v927 = vmax.f32 %v823, 0.0
    %v928 = vmax.f32 %v826, 0.0
    %v929 = vmax.f32 %v828, 0.0
    %v930 = vmax.f32 %v831, 0.0
    %v931 = vmax.f32 %v833, 0.0
    %v932 = vmax.f32 %v836, 0.0
    %v933 = vmax.f32 %v838, 0.0
    %v934 = vmax.f32 %v841, 0.0
    %v935 = vmax.f32 %v843, 0.0
    %v936 = vmax.f32 %v846, 0.0
    %v937 = vmax.f32 %v848, 0.0
    %v938 = vmax.f32 %v851, 0.0
    %v939 = vmax.f32 %v853, 0.0
    %v940 = vmax.f32 %v856, 0.0
    %v941 = vmax.f32 %v858, 0.0
    %v942 = vmax.f32 %v861, 0.0
    %v943 = vmax.f32 %v863, 0.0
    %v944 = vmax.f32 %v866, 0.0
    %v945 = vmax.f32 %v868, 0.0
    %v946 = vmax.f32 %v871, 0.0
    %v947 = vmax.f32 %v873, 0.0
    %v948 = vmax.f32 %v876, 0.0
    %v949 = vmax.f32 %v878, 0.0
    %v950 = vmax.f32 %v881, 0.0
    %v951 = vmax.f32 %v883, 0.0
    %v952 = vmax.f32 %v886, 0.0
    %v953 = vmax.f32 %v888, 0.0
    %v954 = vpack.c.bf16 %v890, %v890
    %v955 = vpack.c.bf16 %v891, %v891
    %v956 = vpack.c.bf16 %v892, %v892
    %v957 = vpack.c.bf16 %v893, %v893
    %v958 = vpack.c.bf16 %v894, %v894
    %v959 = vpack.c.bf16 %v895, %v895
    %v960 = vpack.c.bf16 %v896, %v896
    %v961 = vpack.c.bf16 %v897, %v897
    %v962 = vpack.c.bf16 %v898, %v898
    %v963 = vpack.c.bf16 %v899, %v899
    %v964 = vpack.c.bf16 %v900, %v900
    %v965 = vpack.c.bf16 %v901, %v901
    %v966 = vpack.c.bf16 %v902, %v902
    %v967 = vpack.c.bf16 %v903, %v903
    %v968 = vpack.c.bf16 %v904, %v904
    %v969 = vpack.c.bf16 %v905, %v905
    %v970 = vpack.c.bf16 %v906, %v906
    %v971 = vpack.c.bf16 %v907, %v907
    %v972 = vpack.c.bf16 %v908, %v908
    %v973 = vpack.c.bf16 %v909, %v909
    %v974 = vpack.c.bf16 %v910, %v910
    %v975 = vpack.c.bf16 %v911, %v911
    %v976 = vpack.c.bf16 %v912, %v912
    %v977 = vpack.c.bf16 %v913, %v913
    %v978 = vpack.c.bf16 %v914, %v914
    %v979 = vpack.c.bf16 %v915, %v915
    %v980 = vpack.c.bf16 %v916, %v916
    %v981 = vpack.c.bf16 %v917, %v917
    %v982 = vpack.c.bf16 %v918, %v918
    %v983 = vpack.c.bf16 %v919, %v919
    %v984 = vpack.c.bf16 %v920, %v920
    %v985 = vpack.c.bf16 %v921, %v921
    %v986 = vpack.c.bf16 %v922, %v922
    %v987 = vpack.c.bf16 %v923, %v923
    %v988 = vpack.c.bf16 %v924, %v924
    %v989 = vpack.c.bf16 %v925, %v925
    %v990 = vpack.c.bf16 %v926, %v926
    %v991 = vpack.c.bf16 %v927, %v927
    %v992 = vpack.c.bf16 %v928, %v928
    %v993 = vpack.c.bf16 %v929, %v929
    %v994 = vpack.c.bf16 %v930, %v930
    %v995 = vpack.c.bf16 %v931, %v931
    %v996 = vpack.c.bf16 %v932, %v932
    %v997 = vpack.c.bf16 %v933, %v933
    %v998 = vpack.c.bf16 %v934, %v934
    %v999 = vpack.c.bf16 %v935, %v935
    %v1000 = vpack.c.bf16 %v936, %v936
    %v1001 = vpack.c.bf16 %v937, %v937
    %v1002 = vpack.c.bf16 %v938, %v938
    %v1003 = vpack.c.bf16 %v939, %v939
    %v1004 = vpack.c.bf16 %v940, %v940
    %v1005 = vpack.c.bf16 %v941, %v941
    %v1006 = vpack.c.bf16 %v942, %v942
    %v1007 = vpack.c.bf16 %v943, %v943
    %v1008 = vpack.c.bf16 %v944, %v944
    %v1009 = vpack.c.bf16 %v945, %v945
    %v1010 = vpack.c.bf16 %v946, %v946
    %v1011 = vpack.c.bf16 %v947, %v947
    %v1012 = vpack.c.bf16 %v948, %v948
    %v1013 = vpack.c.bf16 %v949, %v949
    %v1014 = vpack.c.bf16 %v950, %v950
    %v1015 = vpack.c.bf16 %v951, %v951
    %v1016 = vpack.c.bf16 %v952, %v952
    %v1017 = vpack.c.bf16 %v953, %v953
    %1018 = vst [vmem:[#allocation2] sm:$0xf] %v954
    %1019 = vst [vmem:[#allocation2 + $0x4] sm:$0xf] %v955
    %1020 = vst [vmem:[#allocation2 + $0x8] sm:$0xf] %v956
    %1021 = vst [vmem:[#allocation2 + $0xc] sm:$0xf] %v957
    %1022 = vst [vmem:[#allocation2 + $0x10] sm:$0xf] %v958
    %1023 = vst [vmem:[#allocation2 + $0x14] sm:$0xf] %v959
    %1024 = vst [vmem:[#allocation2 + $0x18] sm:$0xf] %v960
    %1025 = vst [vmem:[#allocation2 + $0x1c] sm:$0xf] %v961
    %1026 = vst [vmem:[#allocation2 + $0x20] sm:$0xf] %v962
    %1027 = vst [vmem:[#allocation2 + $0x24] sm:$0xf] %v963
    %1028 = vst [vmem:[#allocation2 + $0x28] sm:$0xf] %v964
    %1029 = vst [vmem:[#allocation2 + $0x2c] sm:$0xf] %v965
    %1030 = vst [vmem:[#allocation2 + $0x30] sm:$0xf] %v966
    %1031 = vst [vmem:[#allocation2 + $0x34] sm:$0xf] %v967
    %1032 = vst [vmem:[#allocation2 + $0x38] sm:$0xf] %v968
    %1033 = vst [vmem:[#allocation2 + $0x3c] sm:$0xf] %v969
    %1034 = vst [vmem:[#allocation2 + $0x40] sm:$0xf] %v970
    %1035 = vst [vmem:[#allocation2 + $0x44] sm:$0xf] %v971
    %1036 = vst [vmem:[#allocation2 + $0x48] sm:$0xf] %v972
    %1037 = vst [vmem:[#allocation2 + $0x4c] sm:$0xf] %v973
    %1038 = vst [vmem:[#allocation2 + $0x50] sm:$0xf] %v974
    %1039 = vst [vmem:[#allocation2 + $0x54] sm:$0xf] %v975
    %1040 = vst [vmem:[#allocation2 + $0x58] sm:$0xf] %v976
    %1041 = vst [vmem:[#allocation2 + $0x5c] sm:$0xf] %v977
    %1042 = vst [vmem:[#allocation2 + $0x60] sm:$0xf] %v978
    %1043 = vst [vmem:[#allocation2 + $0x64] sm:$0xf] %v979
    %1044 = vst [vmem:[#allocation2 + $0x68] sm:$0xf] %v980
    %1045 = vst [vmem:[#allocation2 + $0x6c] sm:$0xf] %v981
    %1046 = vst [vmem:[#allocation2 + $0x70] sm:$0xf] %v982
    %1047 = vst [vmem:[#allocation2 + $0x74] sm:$0xf] %v983
    %1048 = vst [vmem:[#allocation2 + $0x78] sm:$0xf] %v984
    %1049 = vst [vmem:[#allocation2 + $0x7c] sm:$0xf] %v985
    %1050 = vst [vmem:[#allocation2 + $0x80] sm:$0xf] %v986
    %1051 = vst [vmem:[#allocation2 + $0x84] sm:$0xf] %v987
    %1052 = vst [vmem:[#allocation2 + $0x88] sm:$0xf] %v988
    %1053 = vst [vmem:[#allocation2 + $0x8c] sm:$0xf] %v989
    %1054 = vst [vmem:[#allocation2 + $0x90] sm:$0xf] %v990
    %1055 = vst [vmem:[#allocation2 + $0x94] sm:$0xf] %v991
    %1056 = vst [vmem:[#allocation2 + $0x98] sm:$0xf] %v992
    %1057 = vst [vmem:[#allocation2 + $0x9c] sm:$0xf] %v993
    %1058 = vst [vmem:[#allocation2 + $0xa0] sm:$0xf] %v994
    %1059 = vst [vmem:[#allocation2 + $0xa4] sm:$0xf] %v995
    %1060 = vst [vmem:[#allocation2 + $0xa8] sm:$0xf] %v996
    %1061 = vst [vmem:[#allocation2 + $0xac] sm:$0xf] %v997
    %1062 = vst [vmem:[#allocation2 + $0xb0] sm:$0xf] %v998
    %1063 = vst [vmem:[#allocation2 + $0xb4] sm:$0xf] %v999
    %1064 = vst [vmem:[#allocation2 + $0xb8] sm:$0xf] %v1000
    %1065 = vst [vmem:[#allocation2 + $0xbc] sm:$0xf] %v1001
    %1066 = vst [vmem:[#allocation2 + $0xc0] sm:$0xf] %v1002
    %1067 = vst [vmem:[#allocation2 + $0xc4] sm:$0xf] %v1003
    %1068 = vst [vmem:[#allocation2 + $0xc8] sm:$0xf] %v1004
    %1069 = vst [vmem:[#allocation2 + $0xcc] sm:$0xf] %v1005
    %1070 = vst [vmem:[#allocation2 + $0xd0] sm:$0xf] %v1006
    %1071 = vst [vmem:[#allocation2 + $0xd4] sm:$0xf] %v1007
    %1072 = vst [vmem:[#allocation2 + $0xd8] sm:$0xf] %v1008
    %1073 = vst [vmem:[#allocation2 + $0xdc] sm:$0xf] %v1009
    %1074 = vst [vmem:[#allocation2 + $0xe0] sm:$0xf] %v1010
    %1075 = vst [vmem:[#allocation2 + $0xe4] sm:$0xf] %v1011
    %1076 = vst [vmem:[#allocation2 + $0xe8] sm:$0xf] %v1012
    %1077 = vst [vmem:[#allocation2 + $0xec] sm:$0xf] %v1013
    %1078 = vst [vmem:[#allocation2 + $0xf0] sm:$0xf] %v1014
    %1079 = vst [vmem:[#allocation2 + $0xf4] sm:$0xf] %v1015
    %1080 = vst [vmem:[#allocation2 + $0xf8] sm:$0xf] %v1016
    %1081 = vst [vmem:[#allocation2 + $0xfc] sm:$0xf] %v1017
    // Predicated region
    $region14: #{tpu_custom_call.1} parent=1 // pred_check
      _
    $region15: #{tpu_custom_call.1} parent=1 // pred_check_branch
      %1083 = sbr.rel (0) target = $region17
    $region16: #{tpu_custom_call.1} parent=1 // pred_region
      %1085 = vsyncadd [#allocation3], 0
      %s1086 = sshll.u32 [#allocation2], 4
      %s1087 = int_to_ptr.vmem [resolvable:$true] %s1086
      %s1088 = sshll.u32 %s3, 4
      %s1089 = int_to_ptr.hbm [resolvable:$true] %s1088
      %1094 = dma.vmem_to_hbm [thread:$0]  %s1087, 4096, %s1089, [#allocation3], 64, 64, 4
    $region17: #{tpu_custom_call.1} parent=1 // pred_fallthru
      _
    // Predicated region
    $region18: #{tpu_custom_call.1} parent=1 // pred_check
      _
    $region19: #{tpu_custom_call.1} parent=1 // pred_check_branch
      %1096 = sbr.rel (0) target = $region21
    $region20: #{tpu_custom_call.1} parent=1 // pred_region
      %1098 = dma.done [#allocation3], 4096
    $region21: #{tpu_custom_call.1} parent=1 // pred_fallthru
      _
    %1099 = vsyncpa [#allocation3], 1

</llo_original>
